<compile_context>
chip_gen: v5e
topology: v5e:2x2
jax: 0.10.0
libtpu: 0.0.40
codegen_flags: <defaults>
</compile_context>

<pallas_src>
import jax
import jax.numpy as jnp
from jax.experimental import pallas as pl
from jax.experimental.pallas import tpu as pltpu

_LANES = 128                            # vreg lane width
_TARGET_BLOCK_BYTES = 2 * 1024 * 1024   # ~2 MiB/block: >=85% HBM roofline, fits v5e scoped VMEM
_SINGLE_BLOCK_BYTES = 4 * 1024 * 1024   # whole-slab fast path (in+out <= 8 MiB VMEM)
_MIN_GRID_BLOCKS = 4                    # keep >=2 blocks per v7x TensorCore
_SUBLANE_MULT = 32                      # row-tile multiple (covers f32/bf16/int8 sublane packing)


def _relu_kernel(x_ref, o_ref):
    # Single VPU max per vreg; dtype-matched zero avoids promotion/casts.
    x = x_ref[...]
    o_ref[...] = jnp.maximum(x, jnp.zeros((), x.dtype))


def _round_up(n: int, m: int) -> int:
    return ((n + m - 1) // m) * m


def _relu_2d(x2d: jax.Array) -> jax.Array:
    """ReLU over a (rows, 128) lane-dense slab."""
    rows, lanes = x2d.shape
    itemsize = x2d.dtype.itemsize
    slab_bytes = rows * lanes * itemsize

    if slab_bytes <= _SINGLE_BLOCK_BYTES:
        # Small/medium tensor: one whole-slab block, no grid machinery.
        return pl.pallas_call(
            _relu_kernel,
            out_shape=jax.ShapeDtypeStruct(x2d.shape, x2d.dtype),
            input_output_aliases={0: 0},
        )(x2d)

    # Large tensor: tile the sublane (row) axis with ~2 MiB blocks.
    target_rows = max(
        _SUBLANE_MULT,
        (_TARGET_BLOCK_BYTES // (lanes * itemsize)) // _SUBLANE_MULT * _SUBLANE_MULT,
    )
    # Keep at least _MIN_GRID_BLOCKS steps so a "parallel" axis splits across TCs.
    row_tile = min(target_rows,
                   _round_up(pl.cdiv(rows, _MIN_GRID_BLOCKS), _SUBLANE_MULT))
    n_blocks = pl.cdiv(rows, row_tile)  # ragged last block handled by Pallas masking

    return pl.pallas_call(
        _relu_kernel,
        out_shape=jax.ShapeDtypeStruct(x2d.shape, x2d.dtype),
        grid=(n_blocks,),
        in_specs=[pl.BlockSpec((row_tile, lanes), lambda i: (i, 0))],
        out_specs=pl.BlockSpec((row_tile, lanes), lambda i: (i, 0)),
        input_output_aliases={0: 0},
        compiler_params=pltpu.CompilerParams(
            dimension_semantics=("parallel",),
        ),
    )(x2d)


def relu_pallas(x: jax.Array) -> jax.Array:
    """ReLU over an arbitrary-shape tensor, computed lane-dense on TPU."""
    orig_shape = x.shape
    total = x.size
    flat = x.reshape(-1)
    rows = total // _LANES
    rem = total - rows * _LANES

    if rows == 0:
        # Tiny tensor: not worth a kernel launch; let XLA fuse it.
        return jnp.maximum(x, jnp.zeros((), x.dtype))

    if rem == 0:
        # Clean case (the module's [1,128,7,7] input: 6272 = 49*128): pure
        # reshape, no padding, no extra HBM passes.
        return _relu_2d(flat.reshape(rows, _LANES)).reshape(orig_shape)

    # Ragged flat tail (<128 elems): tiny fused max outside the kernel instead
    # of padding the whole tensor.
    main = _relu_2d(flat[: rows * _LANES].reshape(rows, _LANES)).reshape(-1)
    tail = jnp.maximum(flat[rows * _LANES:], jnp.zeros((), x.dtype))
    return jnp.concatenate([main, tail]).reshape(orig_shape)


if __name__ == "__main__":
    key = jax.random.PRNGKey(0)

    # 1) The module's actual forward shape: [1, 128, 7, 7] NCHW (25 KiB f32).
    x696 = jax.random.normal(key, (1, 128, 7, 7), dtype=jnp.float32)
    ref = jnp.maximum(x696, 0.0)
    y = jax.jit(relu_pallas)(x696)
    jax.block_until_ready(y)
    assert y.shape == x696.shape and y.dtype == x696.dtype
    assert jnp.allclose(y, ref), "mismatch vs reference ReLU (small path)"

    # 2) Exercise the large (grid + ragged last row-block) path.
    k2 = jax.random.PRNGKey(1)
    xl = jax.random.normal(k2, (3, 128, 56, 56), dtype=jnp.float32)  # 4.6 MiB slab
    yl = jax.jit(relu_pallas)(xl)
    jax.block_until_ready(yl)
    assert jnp.allclose(yl, jnp.maximum(xl, 0.0)), "mismatch (grid path)"

    # 3) Exercise the non-multiple-of-128 tail path.
    k3 = jax.random.PRNGKey(2)
    xt = jax.random.normal(k3, (2, 5, 7, 7), dtype=jnp.float32)  # 490 elems
    yt = jax.jit(relu_pallas)(xt)
    jax.block_until_ready(yt)
    assert jnp.allclose(yt, jnp.maximum(xt, 0.0)), "mismatch (tail path)"

    print("KERNEL_OK")
</pallas_src>

<mosaic_0001>
module attributes {stable_mosaic.version = 11 : i64} {
  func.func @_relu_kernel(%arg0: memref<49x128xf32, #tpu.memory_space<vmem>>, %arg1: memref<49x128xf32, #tpu.memory_space<vmem>>) attributes {dimension_semantics = [], scalar_prefetch = 0 : i64, scratch_operands = 0 : i64, tpu.core_type = #tpu.core_type<tc>} {
    %c0 = arith.constant 0 : index
    %c0_0 = arith.constant 0 : index
    %0 = vector.load %arg0[%c0, %c0_0] : memref<49x128xf32, #tpu.memory_space<vmem>>, vector<49x128xf32>
    %cst = arith.constant 0.000000e+00 : f32
    %1 = vector.broadcast %cst : f32 to vector<49x128xf32>
    %2 = arith.maximumf %0, %1 : vector<49x128xf32>
    %c0_1 = arith.constant 0 : index
    %c0_2 = arith.constant 0 : index
    %3 = vector.load %arg1[%c0_1, %c0_2] : memref<49x128xf32, #tpu.memory_space<vmem>>, vector<49x128xf32>
    tpu.vector_store %arg1[%c0_1, %c0_2], %2 {strides = array<i32>} : memref<49x128xf32, #tpu.memory_space<vmem>>, vector<49x128xf32>,
    return
  }
}

</mosaic_0001>

<llo_original>
// kernel: relu_pallas.1
$region0: #{relu_pallas.1}
  #allocation0 [shape = 'u32[]', space=smem, size = 0x4, offset = 0x4, fixed_abs, tag = 'smem constant byte address 0x4 - core index']
  #allocation1 [shape = 'u32[72,128]{1,0:T(1,128)}', space=vmem, size = 0x9000, scoped, tag = 'internal scratch']
  %s0 = inlined_call_operand.vmem [shape: f32[49,128], index: 0, kind: input, shape index: {}, may-alias: {0,1}]
  %s1 = inlined_call_operand.vmem [shape: f32[49,128], index: 1, kind: output, shape index: {}, may-alias: {0,1}]
  %s2 = sld [smem:[#allocation0]]
  $region14: #{relu_pallas.1} parent=0
    _
  %s4 = ssub.s32 1, %s2
  %s5 = scalar_select 0, %s4, %s2
  // Predicated region
  $region2: #{relu_pallas.1} parent=0 // pred_check
    _
  $region3: #{relu_pallas.1} parent=0 // pred_check_branch
    %7 = sbr.rel (0) target = $region5
  $region4: #{relu_pallas.1} parent=0 // pred_region
    _
  $region5: #{relu_pallas.1} parent=0 // pred_fallthru
    _
  %v8 = vld [vmem:[%s0] sm:$0xff]
  %v9 = vld [vmem:[%s0 + $0x8] sm:$0xff]
  %v10 = vld [vmem:[%s0 + $0x10] sm:$0xff]
  %v11 = vld [vmem:[%s0 + $0x18] sm:$0xff]
  %v12 = vld [vmem:[%s0 + $0x20] sm:$0xff]
  %v13 = vld [vmem:[%s0 + $0x28] sm:$0xff]
  %v14 = vld [vmem:[%s0 + $0x30] sm:$0x1]
  %v15 = vmax.f32 %v8, 0.0
  %v16 = vmax.f32 %v9, 0.0
  %v17 = vmax.f32 %v10, 0.0
  %v18 = vmax.f32 %v11, 0.0
  %v19 = vmax.f32 %v12, 0.0
  %v20 = vmax.f32 %v13, 0.0
  %v21 = vmax.f32 %v14, 0.0
  %22 = vst [vmem:[%s1] sm:$0xff] %v15
  %23 = vst [vmem:[%s1 + $0x8] sm:$0xff] %v16
  %24 = vst [vmem:[%s1 + $0x10] sm:$0xff] %v17
  %25 = vst [vmem:[%s1 + $0x18] sm:$0xff] %v18
  %26 = vst [vmem:[%s1 + $0x20] sm:$0xff] %v19
  %27 = vst [vmem:[%s1 + $0x28] sm:$0xff] %v20
  %28 = vst [vmem:[%s1 + $0x30] sm:$0x1] %v21
  // Predicated region
  $region6: #{relu_pallas.1} parent=0 // pred_check
    _
  $region7: #{relu_pallas.1} parent=0 // pred_check_branch
    %30 = sbr.rel (0) target = $region9
  $region8: #{relu_pallas.1} parent=0 // pred_region
    _
  $region9: #{relu_pallas.1} parent=0 // pred_fallthru
    _
  // Predicated region
  $region10: #{relu_pallas.1} parent=0 // pred_check
    _
  $region11: #{relu_pallas.1} parent=0 // pred_check_branch
    %32 = sbr.rel (0) target = $region13
  $region12: #{relu_pallas.1} parent=0 // pred_region
    _
  $region13: #{relu_pallas.1} parent=0 // pred_fallthru
    _

</llo_original>
